<compile_context>
chip_gen: v7x
topology: tpu7x:2x2x1
jax: 0.10.0
libtpu: 0.0.40
codegen_flags: <defaults>
</compile_context>

<pallas_src>
import jax
import jax.numpy as jnp
from jax import lax
from jax.experimental import pallas as pl
from jax.experimental.pallas import tpu as pltpu

EPS = 1e-8  # matches F.cosine_similarity default eps


def _cos_sim_loss_kernel(x_ref, o_ref, gram_ref):
    # x_ref:    (Bt, N, tk) input block (batch chunk x maps x feature chunk).
    # o_ref:    (1, 1) f32 SMEM output — partial sum for this batch chunk.
    # gram_ref: (Bt, N, N) f32 VMEM accumulator, resident across the k axis.
    k = pl.program_id(1)

    @pl.when(k == 0)
    def _():
        gram_ref[...] = jnp.zeros_like(gram_ref)

    xb = x_ref[...]  # keep input dtype (bf16 stays bf16) — MXU accumulates in f32
    # Batched Gram update contracting the feature axis directly (no transpose).
    gram_ref[...] += jnp.einsum(
        "bnd,bmd->bnm", xb, xb, preferred_element_type=jnp.float32
    )

    @pl.when(k == pl.num_programs(1) - 1)
    def _():
        g = gram_ref[...]                                    # (Bt, N, N) f32
        n = g.shape[-1]
        row = lax.broadcasted_iota(jnp.int32, (n, n), 0)
        col = lax.broadcasted_iota(jnp.int32, (n, n), 1)
        eye = (row == col)[None]                             # (1, N, N)
        masked = jnp.where(eye, g, jnp.float32(0.0))
        # Squared norms come from the Gram diagonal — no extra (N, D) pass.
        # Reduce along both axes so we get row- and column-broadcast layouts
        # without an in-kernel transpose (the Gram matrix is exactly symmetric).
        norm_row = jnp.sqrt(jnp.sum(masked, axis=2, keepdims=True))   # (Bt, N, 1)
        norm_col = jnp.sqrt(jnp.sum(masked, axis=1, keepdims=True))   # (Bt, 1, N)
        denom = jnp.maximum(norm_row * norm_col, EPS)                 # (Bt, N, N)
        cos = g / denom            # exact divide: epilogue runs once per block
        cos = jnp.where(eye, jnp.float32(1.0), cos)  # diagonal stays 1.0
        o_ref[0, 0] = jnp.sum(cos)


def _round_up(x, m):
    return ((x + m - 1) // m) * m


def cos_sim_loss(pred, *, tk_max=2048, block_bytes=2 * 1024 * 1024):
    """Pallas TPU implementation of CosSim_Loss.forward.

    pred: (B, N, H, W) array. Returns a float32 scalar = mean of the (B, N, N)
    symmetric cosine-similarity tensor with unit diagonal.
    """
    B, N, H, W = pred.shape
    D = H * W
    x = pred.reshape(B, N, D)
    itemsize = jnp.dtype(x.dtype).itemsize

    # --- tile selection ------------------------------------------------------
    LANE = 128
    # Contraction tile: lane-dense multiple of 128, capped so double-buffered
    # input blocks stay at a few MiB (safe for v7x's 64 MiB physical VMEM).
    tk = min(_round_up(D, LANE), tk_max)
    Dp = _round_up(D, tk)          # zero-pad D to a multiple of tk (harmless)
    nk = Dp // tk
    # Batch chunk: amortize the ~0.35 us per-grid-step overhead with one large
    # lane-dense DMA per step instead of one tiny (1, N, D) slab.
    bt = max(1, block_bytes // (N * tk * itemsize))
    bt = min(bt, B)
    Bp = _round_up(B, bt)          # zero-pad batch; corrected exactly below
    nb = Bp // bt

    if Bp != B or Dp != D:
        x = jnp.pad(x, ((0, Bp - B), (0, 0), (0, Dp - D)))

    cost = pl.CostEstimate(
        flops=2 * Bp * N * N * Dp,
        transcendentals=Bp * N,
        bytes_accessed=Bp * N * Dp * itemsize + nb * 4,
    )

    partials = pl.pallas_call(
        _cos_sim_loss_kernel,
        out_shape=jax.ShapeDtypeStruct((nb, 1), jnp.float32),
        grid_spec=pltpu.PrefetchScalarGridSpec(
            num_scalar_prefetch=0,
            grid=(nb, nk),
            in_specs=[pl.BlockSpec((bt, N, tk), lambda b, k: (b, 0, k))],
            out_specs=pl.BlockSpec(
                (1, 1),
                lambda b, k: (b, 0),
                memory_space=pltpu.MemorySpace.SMEM,
            ),
            scratch_shapes=[pltpu.VMEM((bt, N, N), jnp.float32)],
        ),
        compiler_params=pltpu.CompilerParams(
            # batch-chunk axis is independent (megacore-shardable on v7x);
            # the contraction axis carries the Gram accumulator.
            dimension_semantics=("parallel", "arbitrary"),
        ),
        cost_estimate=cost,
    )(x)

    total = jnp.sum(partials)
    # Zero-padded batch items contribute exactly N each (forced unit diagonal).
    total = total - jnp.float32((Bp - B) * N)
    return (total / jnp.float32(B * N * N)).astype(jnp.float32)


def _reference(pred):
    # Pure-JAX reference mirroring the PyTorch loops.
    B, N, H, W = pred.shape
    x = pred.reshape(B, N, H * W).astype(jnp.float32)
    g = jnp.einsum("bnd,bmd->bnm", x, x)
    norm = jnp.sqrt(jnp.sum(x * x, axis=-1))               # (B, N)
    denom = jnp.maximum(norm[:, :, None] * norm[:, None, :], EPS)
    cos = g / denom
    eye = jnp.eye(N, dtype=bool)[None]
    cos = jnp.where(eye, 1.0, cos)
    return jnp.mean(cos)


if __name__ == "__main__":
    key = jax.random.PRNGKey(0)
    pred = jax.random.normal(key, (2, 4, 16, 16), dtype=jnp.float32)

    loss = cos_sim_loss(pred)
    jax.block_until_ready(loss)

    ref = _reference(pred)
    assert jnp.allclose(loss, ref, rtol=1e-5, atol=1e-5), (loss, ref)
    print("KERNEL_OK")
</pallas_src>

<mosaic_0001>
module attributes {stable_mosaic.version = 11 : i64} {
  func.func @_cos_sim_loss_kernel(%arg0: i32, %arg1: i32, %arg2: memref<2x4x256xf32, #tpu.memory_space<vmem>>, %arg3: memref<1x1xf32, #tpu.memory_space<smem>>, %arg4: memref<2x4x4xf32, #tpu.memory_space<vmem>>) attributes {dimension_semantics = [#tpu.dimension_semantics<parallel>, #tpu.dimension_semantics<arbitrary>], iteration_bounds = array<i64: 1, 1>, scalar_prefetch = 0 : i64, scratch_operands = 1 : i64, tpu.core_type = #tpu.core_type<tc>, window_params = [{transform_indices = @transform_0, window_bounds = array<i64: 2, 4, 256>}, {transform_indices = @transform_1, window_bounds = array<i64: 1, 1>}]} {
    %c0_i32 = arith.constant 0 : i32
    %0 = arith.cmpi eq, %arg1, %c0_i32 : i32
    %1 = arith.extui %0 : i1 to i32
    %c0_i32_0 = arith.constant 0 : i32
    %2 = arith.cmpi ne, %1, %c0_i32_0 : i32
    scf.if %2 {
      %cst_11 = arith.constant 0.000000e+00 : f32
      %11 = vector.broadcast %cst_11 : f32 to vector<2x4x4xf32>
      %c0_12 = arith.constant 0 : index
      %c0_13 = arith.constant 0 : index
      %c0_14 = arith.constant 0 : index
      %12 = vector.load %arg4[%c0_12, %c0_13, %c0_14] : memref<2x4x4xf32, #tpu.memory_space<vmem>>, vector<2x4x4xf32>
      tpu.vector_store %arg4[%c0_12, %c0_13, %c0_14], %11 {strides = array<i32>} : memref<2x4x4xf32, #tpu.memory_space<vmem>>, vector<2x4x4xf32>,
    } else {
    }
    %c0 = arith.constant 0 : index
    %c0_1 = arith.constant 0 : index
    %c0_2 = arith.constant 0 : index
    %3 = vector.load %arg2[%c0, %c0_1, %c0_2] : memref<2x4x256xf32, #tpu.memory_space<vmem>>, vector<2x4x256xf32>
    %c0_3 = arith.constant 0 : index
    %c0_4 = arith.constant 0 : index
    %c0_5 = arith.constant 0 : index
    %4 = vector.load %arg4[%c0_3, %c0_4, %c0_5] : memref<2x4x4xf32, #tpu.memory_space<vmem>>, vector<2x4x4xf32>
    "tpu.trace_start"() <{level = 10 : i32, message = "bnd,bmd->bnm"}> : () -> ()
    %cst = arith.constant dense<0.000000e+00> : vector<2x4x4xf32>
    %5 = tpu.matmul %3, %3, %cst {dimension_numbers = #tpu.dot_dimension_numbers<[2], [2], [1], [1], [0, 0, 0, 1, 1, 1], [0], [0]>} : vector<2x4x256xf32>, vector<2x4x256xf32>, vector<2x4x4xf32> -> vector<2x4x4xf32>
    "tpu.trace_stop"() : () -> ()
    %6 = arith.addf %4, %5 : vector<2x4x4xf32>
    %c0_6 = arith.constant 0 : index
    %c0_7 = arith.constant 0 : index
    %c0_8 = arith.constant 0 : index
    %7 = vector.load %arg4[%c0_6, %c0_7, %c0_8] : memref<2x4x4xf32, #tpu.memory_space<vmem>>, vector<2x4x4xf32>
    tpu.vector_store %arg4[%c0_6, %c0_7, %c0_8], %6 {strides = array<i32>} : memref<2x4x4xf32, #tpu.memory_space<vmem>>, vector<2x4x4xf32>,
    %c0_i32_9 = arith.constant 0 : i32
    %8 = arith.cmpi eq, %arg1, %c0_i32_9 : i32
    %9 = arith.extui %8 : i1 to i32
    %c0_i32_10 = arith.constant 0 : i32
    %10 = arith.cmpi ne, %9, %c0_i32_10 : i32
    scf.if %10 {
      %c0_11 = arith.constant 0 : index
      %c0_12 = arith.constant 0 : index
      %c0_13 = arith.constant 0 : index
      %11 = vector.load %arg4[%c0_11, %c0_12, %c0_13] : memref<2x4x4xf32, #tpu.memory_space<vmem>>, vector<2x4x4xf32>
      %12 = tpu.iota {dimensions = array<i32: 0>} : vector<4x4xi32>
      %13 = tpu.iota {dimensions = array<i32: 1>} : vector<4x4xi32>
      %14 = arith.cmpi eq, %12, %13 : vector<4x4xi32>
      %15 = vector.shape_cast %14 : vector<4x4xi1> to vector<1x4x4xi1>
      %cst_14 = arith.constant 0.000000e+00 : f32
      %16 = vector.shape_cast %15 : vector<1x4x4xi1> to vector<1x4x4xi1>
      %17 = vector.broadcast %16 : vector<1x4x4xi1> to vector<2x4x4xi1>
      %18 = vector.broadcast %cst_14 : f32 to vector<2x4x4xf32>
      %19 = arith.select %17, %11, %18 : vector<2x4x4xi1>, vector<2x4x4xf32>
      %cst_15 = arith.constant dense<0.000000e+00> : vector<2x4xf32>
      %20 = vector.multi_reduction <add>, %19, %cst_15 [2] : vector<2x4x4xf32> to vector<2x4xf32>
      %21 = vector.shape_cast %20 : vector<2x4xf32> to vector<2x4x1xf32>
      %22 = math.sqrt %21 : vector<2x4x1xf32>
      %cst_16 = arith.constant dense<0.000000e+00> : vector<2x4xf32>
      %23 = vector.multi_reduction <add>, %19, %cst_16 [1] : vector<2x4x4xf32> to vector<2x4xf32>
      %24 = vector.shape_cast %23 : vector<2x4xf32> to vector<2x1x4xf32>
      %25 = math.sqrt %24 : vector<2x1x4xf32>
      %26 = vector.broadcast %22 : vector<2x4x1xf32> to vector<2x4x4xf32>
      %27 = vector.broadcast %25 : vector<2x1x4xf32> to vector<2x4x4xf32>
      %28 = arith.mulf %26, %27 : vector<2x4x4xf32>
      %cst_17 = arith.constant 9.99999993E-9 : f32
      %29 = vector.broadcast %cst_17 : f32 to vector<2x4x4xf32>
      %30 = arith.maximumf %28, %29 : vector<2x4x4xf32>
      %31 = arith.divf %11, %30 : vector<2x4x4xf32>
      %cst_18 = arith.constant 1.000000e+00 : f32
      %32 = vector.shape_cast %15 : vector<1x4x4xi1> to vector<1x4x4xi1>
      %33 = vector.broadcast %32 : vector<1x4x4xi1> to vector<2x4x4xi1>
      %34 = vector.broadcast %cst_18 : f32 to vector<2x4x4xf32>
      %35 = arith.select %33, %34, %31 : vector<2x4x4xi1>, vector<2x4x4xf32>
      %36 = vector.shape_cast %35 : vector<2x4x4xf32> to vector<1x2x4x4xf32>
      %cst_19 = arith.constant dense<0.000000e+00> : vector<1xf32>
      %37 = vector.multi_reduction <add>, %36, %cst_19 [1, 2, 3] : vector<1x2x4x4xf32> to vector<1xf32>
      %38 = vector.shape_cast %37 : vector<1xf32> to vector<1x1x1x1xf32>
      %39 = vector.extract %38[0, 0, 0, 0] : f32 from vector<1x1x1x1xf32>
      %c0_20 = arith.constant 0 : index
      %c0_21 = arith.constant 0 : index
      %40 = memref.load %arg3[%c0_20, %c0_21] : memref<1x1xf32, #tpu.memory_space<smem>>
      memref.store %39, %arg3[%c0_20, %c0_21] : memref<1x1xf32, #tpu.memory_space<smem>>
    } else {
    }
    return
  }
  func.func @transform_0(%arg0: i32, %arg1: i32) -> (i32, i32, i32) {
    %c0_i32 = arith.constant 0 : i32
    %c0_i32_0 = arith.constant 0 : i32
    return %arg0, %c0_i32, %arg1 : i32, i32, i32
  }
  func.func @transform_1(%arg0: i32, %arg1: i32) -> (i32, i32) {
    %c0_i32 = arith.constant 0 : i32
    %c0_i32_0 = arith.constant 0 : i32
    return %arg0, %c0_i32 : i32, i32
  }
}

</mosaic_0001>

<llo_original>
// kernel: tpu_custom_call.1
$region0: #{tpu_custom_call.1}
  #allocation0 [shape = 'u32[]', space=smem, size = 0x4, offset = 0x4, fixed_abs, tag = 'smem constant byte address 0x4 - core index']
  #allocation1 [shape = 'u32[144,128]{1,0:T(1,128)}', space=vmem, size = 0x12000, scoped, tag = 'internal scratch']
  #allocation2 [shape = 'f32[2,4,4]{2,1,0:T(4,128)}', space=vmem, size = 0x1000, scoped, tag = 'scratch operand']
  %s0 = inlined_call_operand.hbm [shape: f32[2,4,256], index: 0, kind: input, shape index: {}]
  %s1 = inlined_call_operand.hbm [shape: f32[1,1], index: 1, kind: output, shape index: {}]
  %s2 = sld [smem:[#allocation0]]
  $region26: #{tpu_custom_call.1} parent=0
    _
  %s4 = ssub.s32 1, %s2
  %s5 = scalar_select 0, %s4, %s2
  $region1: #{tpu_custom_call.1} parent=0
    #allocation3 [shape = 'u8[8192]{0}', space=vmem, size = 0x2000, scoped, tag = 'input window, operand 0, single buffered']
    #allocation4 [shape = 's32[1]{0}', space=sflag, size = 0x4, scoped, tag = 'scoped memory for tpu_custom_call.1']
    #allocation5 [shape = 's32[1]{0}', space=sflag, size = 0x4, scoped, tag = 'scoped memory for tpu_custom_call.1']
    #allocation6 [shape = 'u8[512]{0}', space=smem, size = 0x200, scoped, tag = 'output window, operand 0, single buffered']
    %6 = vsyncpa [#allocation4], 0
    %7 = vsyncpa [#allocation5], 0
    // Predicated region
    $region2: #{tpu_custom_call.1} parent=1 // pred_check
      _
    $region3: #{tpu_custom_call.1} parent=1 // pred_check_branch
      %9 = sbr.rel (0) target = $region5
    $region4: #{tpu_custom_call.1} parent=1 // pred_region
      %s11 = ssub.s32 256, 256
      %12 = vsyncadd [#allocation4], %s11
      %s13 = sshll.u32 [#allocation3], 4
      %s14 = int_to_ptr.vmem [resolvable:$true] %s13
      %19 = dma.hbm_to_vmem [thread:$0]  %s0, 256, %s14, [#allocation4], 128, 128, 8
    $region5: #{tpu_custom_call.1} parent=1 // pred_fallthru
      _
    // Predicated region
    $region6: #{tpu_custom_call.1} parent=1 // pred_check
      _
    $region7: #{tpu_custom_call.1} parent=1 // pred_check_branch
      %21 = sbr.rel (0) target = $region9
    $region8: #{tpu_custom_call.1} parent=1 // pred_region
      %22 = dma.done [#allocation4], 256
    $region9: #{tpu_custom_call.1} parent=1 // pred_fallthru
      _
    %p23 = scmp.eq.s32.totalorder 0, 0
    // Predicated region
    $region10: #{tpu_custom_call.1} parent=1 // pred_check
      %p24 = pneg %p23
    $region11: #{tpu_custom_call.1} parent=1 // pred_check_branch
      %26 = sbr.rel (%p24) target = $region13
    $region12: #{tpu_custom_call.1} parent=1 // pred_region
      %vm27 = vcmask 27648
      %28 = vst.msk [vmem:[#allocation2] sm:$0xf] %vm27, 0.0
      %29 = vst.msk [vmem:[#allocation2 + $0x4] sm:$0xf] %vm27, 0.0
    $region13: #{tpu_custom_call.1} parent=1 // pred_fallthru
      _
    %v30 = vld [vmem:[#allocation3] sm:$0xff]
    %v31 = vld [vmem:[#allocation3 + $0x8] sm:$0xff]
    %v32 = vld [vmem:[#allocation2] sm:$0xf]
    %v33 = vld [vmem:[#allocation2 + $0x4] sm:$0xf]
    %v35 = vcombine.high %v30, %v30
    %37 = vmatprep.subr.mxu0 %v35
    %38 = vmatpush1.xpose.msra.mxu0 %v30
    %39 = vmatprep.subr.mxu0 0.0
    %40 = vmatpush1.xpose.msra.mxu0 0.0
    %41 = vmatprep.subr.mxu0 0.0
    %42 = vmatpush1.xpose.msra.mxu0 0.0
    %43 = vmatprep.subr.mxu0 0.0
    %44 = vmatpush1.xpose.msra.mxu0 0.0
    %45 = vmatprep.subr.mxu0 0.0
    %46 = vmatpush1.xpose.msra.mxu0 0.0
    %47 = vmatprep.subr.mxu0 0.0
    %48 = vmatpush1.xpose.msra.mxu0 0.0
    %49 = vmatprep.subr.mxu0 0.0
    %50 = vmatpush1.xpose.msra.mxu0 0.0
    %51 = vmatprep.subr.mxu0 0.0
    %52 = vmatpush1.xpose.msra.mxu0 0.0
    %53 = vmatprep.subr.mxu0 0.0
    %54 = vmatpush1.xpose.msra.mxu0 0.0
    %55 = vmatprep.subr.mxu0 0.0
    %56 = vmatpush1.xpose.msra.mxu0 0.0
    %57 = vmatprep.subr.mxu0 0.0
    %58 = vmatpush1.xpose.msra.mxu0 0.0
    %59 = vmatprep.subr.mxu0 0.0
    %60 = vmatpush1.xpose.msra.mxu0 0.0
    %61 = vmatprep.subr.mxu0 0.0
    %62 = vmatpush1.xpose.msra.mxu0 0.0
    %63 = vmatprep.subr.mxu0 0.0
    %64 = vmatpush1.xpose.msra.mxu0 0.0
    %65 = vmatprep.subr.mxu0 0.0
    %66 = vmatpush1.xpose.msra.mxu0 0.0
    %67 = vmatprep.subr.mxu0 0.0
    %68 = vmatpush1.xpose.msra.mxu0 0.0
    %69 = vmatprep.subr.mxu0 0.0
    %70 = vmatpush1.xpose.msra.mxu0 0.0
    %71 = vmatprep.subr.mxu0 0.0
    %72 = vmatpush1.xpose.msra.mxu0 0.0
    %73 = vmatprep.subr.mxu0 0.0
    %74 = vmatpush1.xpose.msra.mxu0 0.0
    %75 = vmatprep.subr.mxu0 0.0
    %76 = vmatpush1.xpose.msra.mxu0 0.0
    %77 = vmatprep.subr.mxu0 0.0
    %78 = vmatpush1.xpose.msra.mxu0 0.0
    %79 = vmatprep.subr.mxu0 0.0
    %80 = vmatpush1.xpose.msra.mxu0 0.0
    %81 = vmatprep.subr.mxu0 0.0
    %82 = vmatpush1.xpose.msra.mxu0 0.0
    %83 = vmatprep.subr.mxu0 0.0
    %84 = vmatpush1.xpose.msra.mxu0 0.0
    %85 = vmatprep.subr.mxu0 0.0
    %86 = vmatpush1.xpose.msra.mxu0 0.0
    %87 = vmatprep.subr.mxu0 0.0
    %88 = vmatpush1.xpose.msra.mxu0 0.0
    %89 = vmatprep.subr.mxu0 0.0
    %90 = vmatpush1.xpose.msra.mxu0 0.0
    %91 = vmatprep.subr.mxu0 0.0
    %92 = vmatpush1.xpose.msra.mxu0 0.0
    %93 = vmatprep.subr.mxu0 0.0
    %94 = vmatpush1.xpose.msra.mxu0 0.0
    %95 = vmatprep.subr.mxu0 0.0
    %96 = vmatpush1.xpose.msra.mxu0 0.0
    %97 = vmatprep.subr.mxu0 0.0
    %98 = vmatpush1.xpose.msra.mxu0 0.0
    %99 = vmatprep.subr.mxu0 0.0
    %100 = vmatpush1.xpose.msra.mxu0 0.0
    %101 = vmatprep.mubr.f32.mxu0 %v35
    %102 = vmatmul.mubr.f32.gmra.mrb[0].mxu0 %v30
    %v103 = vpop.f32.mrb[0].mxu0
    %v104 = vadd.f32 0.0, %v103
    %v105 = vpop.f32.mrb[0].mxu0
    %106 = vdwg.mxu0
    %v108 = vcombine.high %v31, %v31
    %110 = vmatprep.subr.mxu0 %v108
    %111 = vmatpush1.xpose.msra.mxu0 %v31
    %112 = vmatprep.subr.mxu0 0.0
    %113 = vmatpush1.xpose.msra.mxu0 0.0
    %114 = vmatprep.subr.mxu0 0.0
    %115 = vmatpush1.xpose.msra.mxu0 0.0
    %116 = vmatprep.subr.mxu0 0.0
    %117 = vmatpush1.xpose.msra.mxu0 0.0
    %118 = vmatprep.subr.mxu0 0.0
    %119 = vmatpush1.xpose.msra.mxu0 0.0
    %120 = vmatprep.subr.mxu0 0.0
    %121 = vmatpush1.xpose.msra.mxu0 0.0
    %122 = vmatprep.subr.mxu0 0.0
    %123 = vmatpush1.xpose.msra.mxu0 0.0
    %124 = vmatprep.subr.mxu0 0.0
    %125 = vmatpush1.xpose.msra.mxu0 0.0
    %126 = vmatprep.subr.mxu0 0.0
    %127 = vmatpush1.xpose.msra.mxu0 0.0
    %128 = vmatprep.subr.mxu0 0.0
    %129 = vmatpush1.xpose.msra.mxu0 0.0
    %130 = vmatprep.subr.mxu0 0.0
    %131 = vmatpush1.xpose.msra.mxu0 0.0
    %132 = vmatprep.subr.mxu0 0.0
    %133 = vmatpush1.xpose.msra.mxu0 0.0
    %134 = vmatprep.subr.mxu0 0.0
    %135 = vmatpush1.xpose.msra.mxu0 0.0
    %136 = vmatprep.subr.mxu0 0.0
    %137 = vmatpush1.xpose.msra.mxu0 0.0
    %138 = vmatprep.subr.mxu0 0.0
    %139 = vmatpush1.xpose.msra.mxu0 0.0
    %140 = vmatprep.subr.mxu0 0.0
    %141 = vmatpush1.xpose.msra.mxu0 0.0
    %142 = vmatprep.subr.mxu0 0.0
    %143 = vmatpush1.xpose.msra.mxu0 0.0
    %144 = vmatprep.subr.mxu0 0.0
    %145 = vmatpush1.xpose.msra.mxu0 0.0
    %146 = vmatprep.subr.mxu0 0.0
    %147 = vmatpush1.xpose.msra.mxu0 0.0
    %148 = vmatprep.subr.mxu0 0.0
    %149 = vmatpush1.xpose.msra.mxu0 0.0
    %150 = vmatprep.subr.mxu0 0.0
    %151 = vmatpush1.xpose.msra.mxu0 0.0
    %152 = vmatprep.subr.mxu0 0.0
    %153 = vmatpush1.xpose.msra.mxu0 0.0
    %154 = vmatprep.subr.mxu0 0.0
    %155 = vmatpush1.xpose.msra.mxu0 0.0
    %156 = vmatprep.subr.mxu0 0.0
    %157 = vmatpush1.xpose.msra.mxu0 0.0
    %158 = vmatprep.subr.mxu0 0.0
    %159 = vmatpush1.xpose.msra.mxu0 0.0
    %160 = vmatprep.subr.mxu0 0.0
    %161 = vmatpush1.xpose.msra.mxu0 0.0
    %162 = vmatprep.subr.mxu0 0.0
    %163 = vmatpush1.xpose.msra.mxu0 0.0
    %164 = vmatprep.subr.mxu0 0.0
    %165 = vmatpush1.xpose.msra.mxu0 0.0
    %166 = vmatprep.subr.mxu0 0.0
    %167 = vmatpush1.xpose.msra.mxu0 0.0
    %168 = vmatprep.subr.mxu0 0.0
    %169 = vmatpush1.xpose.msra.mxu0 0.0
    %170 = vmatprep.subr.mxu0 0.0
    %171 = vmatpush1.xpose.msra.mxu0 0.0
    %172 = vmatprep.subr.mxu0 0.0
    %173 = vmatpush1.xpose.msra.mxu0 0.0
    %174 = vmatprep.mubr.f32.mxu0 %v108
    %175 = vmatmul.mubr.f32.gmra.mrb[0].mxu0 %v31
    %v176 = vpop.f32.mrb[0].mxu0
    %v177 = vadd.f32 0.0, %v176
    %v178 = vpop.f32.mrb[0].mxu0
    %179 = vdwg.mxu0
    %v180 = vadd.f32 %v32, %v104
    %v181 = vadd.f32 %v33, %v177
    %vm182 = vcmask 27648
    %183 = vst.msk [vmem:[#allocation2] sm:$0xf] %vm182, %v180
    %184 = vst.msk [vmem:[#allocation2 + $0x4] sm:$0xf] %vm182, %v181
    // Predicated region
    $region14: #{tpu_custom_call.1} parent=1 // pred_check
      %p185 = pneg %p23
    $region15: #{tpu_custom_call.1} parent=1 // pred_check_branch
      %187 = sbr.rel (%p185) target = $region17
    $region16: #{tpu_custom_call.1} parent=1 // pred_region
      %v188 = vld [vmem:[#allocation2] sm:$0xf]
      %v189 = vld [vmem:[#allocation2 + $0x4] sm:$0xf]
      %v190 = vlaneseq
      %v191 = vshrl.u32 %v190, 7
      %v192 = vlaneseq
      %v193 = vand.u32 %v192, 127
      %vm194 = vcmp.eq.s32.totalorder %v191, %v193
      %v195 = vsel %vm194, 1, 0
      %vm196 = vcmp.eq.s32.totalorder %v195, 1
      %v197 = vsel %vm196, %v188, 0.0
      %v198 = vsel %vm196, %v189, 0.0
      %v199 = vsel %vm182, %v197, 0.0
      %200 = vadd.xlane.f32.xlu0 %v199
      %v201 = vpop.xlane.xlu0 %200
      %v202 = vsel %vm182, %v198, 0.0
      %203 = vadd.xlane.f32.xlu0 %v202
      %v204 = vpop.xlane.xlu0 %203
      %v205 = vrsqrt.pop %v201
      %v206 = vmul.f32 %v201, %v205
      %vm207 = vcmp.eq.f32.partialorder %v201, inf
      %v208 = vsel %vm207, %v201, %v206
      %vm209 = vcmp.eq.f32.partialorder %v201, 0.0
      %v210 = vand.u32 %v201, 2147483648
      %v211 = vsel %vm209, %v210, %v208
      %v212 = vrsqrt.pop %v204
      %v213 = vmul.f32 %v204, %v212
      %vm214 = vcmp.eq.f32.partialorder %v204, inf
      %v215 = vsel %vm214, %v204, %v213
      %vm216 = vcmp.eq.f32.partialorder %v204, 0.0
      %v217 = vand.u32 %v204, 2147483648
      %v218 = vsel %vm216, %v217, %v215
      %v219 = vrot.slane %v199, 4
      %v220 = vadd.f32 %v199, %v219
      %v221 = vrot.slane %v220, 2
      %v222 = vadd.f32 %v220, %v221
      %v223 = vrot.slane %v222, 1
      %v224 = vadd.f32 %v222, %v223
      %v225 = vrot.slane %v202, 4
      %v226 = vadd.f32 %v202, %v225
      %v227 = vrot.slane %v226, 2
      %v228 = vadd.f32 %v226, %v227
      %v229 = vrot.slane %v228, 1
      %v230 = vadd.f32 %v228, %v229
      %v231 = vrsqrt.pop %v224
      %v232 = vmul.f32 %v224, %v231
      %vm233 = vcmp.eq.f32.partialorder %v224, inf
      %v234 = vsel %vm233, %v224, %v232
      %vm235 = vcmp.eq.f32.partialorder %v224, 0.0
      %v236 = vand.u32 %v224, 2147483648
      %v237 = vsel %vm235, %v236, %v234
      %v238 = vrsqrt.pop %v230
      %v239 = vmul.f32 %v230, %v238
      %vm240 = vcmp.eq.f32.partialorder %v230, inf
      %v241 = vsel %vm240, %v230, %v239
      %vm242 = vcmp.eq.f32.partialorder %v230, 0.0
      %v243 = vand.u32 %v230, 2147483648
      %v244 = vsel %vm242, %v243, %v241
      %v245 = vmul.f32 %v211, %v237
      %v246 = vmul.f32 %v218, %v244
      %v247 = vmax.f32 %v245, 1e-08
      %v248 = vmax.f32 %v246, 1e-08
      %v249 = vrcp.pop %v247
      %v250 = vmul.f32 %v188, %v249
      %v251 = vrcp.pop %v248
      %v252 = vmul.f32 %v189, %v251
      %v253 = vsel %vm196, 1.0, %v250
      %v254 = vsel %vm196, 1.0, %v252
      %v255 = vsel %vm182, %v253, 0.0
      %v256 = vsel %vm182, %v254, 0.0
      %v257 = vadd.f32 %v255, %v256
      %258 = vadd.xlane.f32.xlu0 %v257
      %v259 = vpop.xlane.xlu0 %258
      %v260 = vrot.slane %v259, 4
      %v261 = vadd.f32 %v259, %v260
      %v262 = vrot.slane %v261, 2
      %v263 = vadd.f32 %v261, %v262
      %v264 = vrot.slane %v263, 1
      %v265 = vadd.f32 %v263, %v264
      %s266 = vtos %v265
      %s267 = scalar_lea.smem [#allocation6], 0
      %268 = sst [smem:[%s267]] %s266
    $region17: #{tpu_custom_call.1} parent=1 // pred_fallthru
      _
    // Predicated region
    $region18: #{tpu_custom_call.1} parent=1 // pred_check
      _
    $region19: #{tpu_custom_call.1} parent=1 // pred_check_branch
      %270 = sbr.rel (0) target = $region21
    $region20: #{tpu_custom_call.1} parent=1 // pred_region
      %s272 = ssub.s32 16, 16
      %273 = vsyncadd [#allocation5], %s272
      %276 = dma.smem_to_hbm [#allocation6], 16, %s1, [#allocation5]
    $region21: #{tpu_custom_call.1} parent=1 // pred_fallthru
      _
    // Predicated region
    $region22: #{tpu_custom_call.1} parent=1 // pred_check
      _
    $region23: #{tpu_custom_call.1} parent=1 // pred_check_branch
      %278 = sbr.rel (0) target = $region25
    $region24: #{tpu_custom_call.1} parent=1 // pred_region
      %279 = dma.done [#allocation5], 16
    $region25: #{tpu_custom_call.1} parent=1 // pred_fallthru
      _
    %280 = sfence
    %281 = vsyncpa [#allocation4], 1
    %282 = vsyncpa [#allocation5], 1

</llo_original>
